<compile_context>
chip_gen: v7x
topology: tpu7x:2x2x1
jax: 0.10.0
libtpu: 0.0.40
codegen_flags: <defaults>
</compile_context>

<pallas_src>
import functools

import jax
import jax.numpy as jnp
from jax import lax
from jax.experimental import pallas as pl
from jax.experimental.pallas import tpu as pltpu

LANES = 128
SUBLANES = 8
ROW_ALIGN = 16           # sublane-aligned for both f32 (8,128) and bf16 (16,128)
MAX_BLOCK_ROWS = 4096    # 4096 x 128 x 4B = 2 MiB per f32 input buffer


def _int_pow(v, g):
    """v**g for small non-negative integer g via VPU multiplies (no EUP)."""
    if g == 0:
        return jnp.ones_like(v)
    out = v
    for _ in range(g - 1):
        out = out * v
    return out


def _dice_focal_kernel(x_ref, t_ref, o_focal_ref, o_xt_ref, o_xpt_ref, *,
                       gamma, eps, steps_per_core, total_blocks, tail_rem,
                       guard_dup):
    c = pl.program_id(0)           # "parallel" core-split axis
    j = pl.program_id(1)           # "arbitrary" reduction axis
    blk = c * steps_per_core + j   # logical block id

    @pl.when(j == 0)
    def _():
        o_focal_ref[...] = jnp.zeros_like(o_focal_ref)
        o_xt_ref[...] = jnp.zeros_like(o_xt_ref)
        o_xpt_ref[...] = jnp.zeros_like(o_xpt_ref)

    def compute_block():
        x = x_ref[...].astype(jnp.float32)
        t = t_ref[...].astype(jnp.float32)
        rows, lanes = x.shape

        # Focal term (clamped probabilities), algebraically trimmed:
        #   focal = -(t*(1-xc)^g*log(xc) + (1-t)*xc^g*log(1-xc))
        #         = -(t*((1-xc)^g*log(xc) - xc^g*log(1-xc)) + xc^g*log(1-xc))
        # We accumulate the positive inner sum P and negate once in the wrapper.
        xc = jnp.clip(x, eps, 1.0 - eps)
        om = 1.0 - xc
        g = float(gamma)
        if g == float(int(g)) and 0 <= int(g) <= 8:
            pow_om = _int_pow(om, int(g))
            pow_x = _int_pow(xc, int(g))
        else:
            pow_om = jnp.power(om, jnp.float32(g))
            pow_x = jnp.power(xc, jnp.float32(g))
        log_xc = jnp.log(xc)       # EUP slot
        log_om = jnp.log(om)       # EUP slot
        a = pow_x * log_om
        p_focal = t * (pow_om * log_xc - a) + a

        # Dice sums use the UNclamped score.
        xt = x * t
        xpt = x + t                # fused sum(x) + sum(t) accumulator

        def fold(v):
            # (rows, 128) -> (1, 8, 128) partial sums: pure vreg adds,
            # no per-step cross-lane/sublane XLU reduction.
            return v.reshape(rows // SUBLANES, SUBLANES, lanes).sum(axis=0)[None]

        def accumulate(pf, xtv, xptv):
            o_focal_ref[...] += fold(pf)
            o_xt_ref[...] += fold(xtv)
            o_xpt_ref[...] += fold(xptv)

        block_elems = rows * lanes
        if tail_rem >= block_elems:
            # Static: every block is completely full -> never mask anything.
            accumulate(p_focal, xt, xpt)
        else:
            # Only the final logical block can contain padded / undefined
            # elements; keep the mask machinery off the hot path elsewhere.
            @pl.when(blk != total_blocks - 1)
            def _():
                accumulate(p_focal, xt, xpt)

            @pl.when(blk == total_blocks - 1)
            def _():
                row = lax.broadcasted_iota(jnp.int32, (rows, lanes), 0)
                lane = lax.broadcasted_iota(jnp.int32, (rows, lanes), 1)
                # Block-local index vs static remaining count: no int32
                # overflow regardless of the global element count.
                valid = (row * lanes + lane) < tail_rem
                zero = jnp.zeros_like(x)
                accumulate(jnp.where(valid, p_focal, zero),
                           jnp.where(valid, xt, zero),
                           jnp.where(valid, xpt, zero))

    if guard_dup:
        # Odd block count split across two cores: the duplicated
        # (index-clamped) block is skipped entirely.
        pl.when(blk < total_blocks)(compute_block)
    else:
        compute_block()


def _tensorcores_per_chip():
    # Only v7x exposes 2 TensorCores to a single Pallas grid; v5e/v6e have 1.
    # TODO(synk): verify on v7x that the "parallel" leading axis actually
    # shards across the two TensorCores (else switch to CORE_PARALLEL).
    try:
        kind = jax.devices()[0].device_kind.lower()
    except Exception:
        return 1
    return 2 if ("v7" in kind or "7x" in kind) else 1


def dice_and_focal_loss(inputs, targets, *, gamma=2.0, eps=1e-3, smooth=1e-5):
    """Pallas implementation of Dice_and_FocalLoss.forward (scalar loss)."""
    assert inputs.shape == targets.shape, "predict & target shapes do not match"
    x = inputs.reshape(-1)
    t = targets.reshape(-1)
    n = x.shape[0]

    # Pad (at most ROW_ALIGN*LANES - 1 elements) so the flat arrays can be
    # viewed as a lane-dense, sublane-aligned 2-D slab.  Padded elements are
    # masked out inside the kernel (last block only), so the pad value is
    # irrelevant.
    chunk = ROW_ALIGN * LANES
    rem = n % chunk
    if rem:
        pad = chunk - rem
        x = jnp.concatenate([x, jnp.zeros((pad,), x.dtype)])
        t = jnp.concatenate([t, jnp.zeros((pad,), t.dtype)])
    rows = x.shape[0] // LANES
    x2 = x.reshape(rows, LANES)
    t2 = t.reshape(rows, LANES)

    block_rows = min(MAX_BLOCK_ROWS, rows)          # rows is a multiple of 16
    total_blocks = pl.cdiv(rows, block_rows)

    num_cores = _tensorcores_per_chip() if total_blocks >= 2 else 1
    steps_per_core = pl.cdiv(total_blocks, num_cores)
    guard_dup = (num_cores * steps_per_core) != total_blocks

    # Static count of real (unpadded) elements in the final logical block.
    tail_rem = int(n - (total_blocks - 1) * block_rows * LANES)

    def in_map(c, j):
        blk = c * steps_per_core + j
        if guard_dup:
            # Clamp so the (skipped) duplicate step never DMAs out of bounds.
            blk = jnp.minimum(blk, total_blocks - 1)
        return (blk, 0)

    tile_spec = pl.BlockSpec((block_rows, LANES), in_map)
    out_spec = pl.BlockSpec((1, SUBLANES, LANES), lambda c, j: (c, 0, 0))
    out_shape = jax.ShapeDtypeStruct((num_cores, SUBLANES, LANES), jnp.float32)

    kernel = functools.partial(
        _dice_focal_kernel, gamma=float(gamma), eps=float(eps),
        steps_per_core=steps_per_core, total_blocks=int(total_blocks),
        tail_rem=tail_rem, guard_dup=guard_dup)

    o_focal, o_xt, o_xpt = pl.pallas_call(
        kernel,
        out_shape=(out_shape, out_shape, out_shape),
        grid=(num_cores, steps_per_core),
        in_specs=[tile_spec, tile_spec],
        out_specs=(out_spec, out_spec, out_spec),
        compiler_params=pltpu.CompilerParams(
            dimension_semantics=("parallel", "arbitrary"),
            vmem_limit_bytes=32 * 1024 * 1024),
    )(x2, t2)

    # Tiny final reductions (3 x num_cores x 4 KiB) done by XLA in the wrapper.
    focal_sum = -jnp.sum(o_focal)          # kernel accumulated +P; focal = -P
    intersect = jnp.sum(o_xt)
    denom = jnp.sum(o_xpt) + jnp.float32(smooth)

    dice_loss = 1.0 - 2.0 * intersect / denom
    focal_loss = focal_sum / jnp.float32(n)
    return (dice_loss + focal_loss).astype(jnp.float32)


def _reference(inputs, targets, gamma=2.0, eps=1e-3, smooth=1e-5):
    x = inputs.astype(jnp.float32)
    t = targets.astype(jnp.float32)
    intersect = jnp.sum(x * t)
    dice = 2.0 * intersect / (jnp.sum(x) + jnp.sum(t) + smooth)
    dice_loss = 1.0 - dice
    xc = jnp.clip(x, eps, 1.0 - eps)
    focal = -(t * (1.0 - xc) ** gamma * jnp.log(xc)
              + (1.0 - t) * xc ** gamma * jnp.log(1.0 - xc))
    return dice_loss + jnp.mean(focal)


if __name__ == "__main__":
    key = jax.random.PRNGKey(0)
    k1, k2 = jax.random.split(key)
    # segmentation-style prediction: (B, C, H, W)
    shape = (2, 4, 16, 16)
    inputs = jax.random.uniform(k1, shape, jnp.float32)               # probabilities
    targets = (jax.random.uniform(k2, shape, jnp.float32) > 0.5)      # binary labels
    targets = targets.astype(jnp.float32)

    out = dice_and_focal_loss(inputs, targets, gamma=2.0, eps=1e-3)
    out = jax.block_until_ready(out)

    ref = _reference(inputs, targets)
    assert jnp.allclose(out, ref, rtol=1e-5, atol=1e-5), (out, ref)
    print("KERNEL_OK")
</pallas_src>

<mosaic_0001>
module attributes {stable_mosaic.version = 11 : i64} {
  func.func @_dice_focal_kernel(%arg0: i32, %arg1: i32, %arg2: memref<16x128xf32, #tpu.memory_space<vmem>>, %arg3: memref<16x128xf32, #tpu.memory_space<vmem>>, %arg4: memref<1x8x128xf32, #tpu.memory_space<vmem>>, %arg5: memref<1x8x128xf32, #tpu.memory_space<vmem>>, %arg6: memref<1x8x128xf32, #tpu.memory_space<vmem>>) attributes {dimension_semantics = [#tpu.dimension_semantics<parallel>, #tpu.dimension_semantics<arbitrary>], iteration_bounds = array<i64: 1, 1>, scalar_prefetch = 0 : i64, scratch_operands = 0 : i64, tpu.core_type = #tpu.core_type<tc>, window_params = [{transform_indices = @transform_0, window_bounds = array<i64: 16, 128>}, {transform_indices = @transform_1, window_bounds = array<i64: 16, 128>}, {transform_indices = @transform_2, window_bounds = array<i64: 1, 8, 128>}, {transform_indices = @transform_3, window_bounds = array<i64: 1, 8, 128>}, {transform_indices = @transform_4, window_bounds = array<i64: 1, 8, 128>}]} {
    %c0_i32 = arith.constant 0 : i32
    %0 = arith.cmpi eq, %arg1, %c0_i32 : i32
    %1 = arith.extui %0 : i1 to i32
    %c0_i32_0 = arith.constant 0 : i32
    %2 = arith.cmpi ne, %1, %c0_i32_0 : i32
    scf.if %2 {
      %cst_27 = arith.constant 0.000000e+00 : f32
      %40 = vector.broadcast %cst_27 : f32 to vector<1x8x128xf32>
      %c0_28 = arith.constant 0 : index
      %c0_29 = arith.constant 0 : index
      %c0_30 = arith.constant 0 : index
      %41 = vector.load %arg4[%c0_28, %c0_29, %c0_30] : memref<1x8x128xf32, #tpu.memory_space<vmem>>, vector<1x8x128xf32>
      tpu.vector_store %arg4[%c0_28, %c0_29, %c0_30], %40 {strides = array<i32>} : memref<1x8x128xf32, #tpu.memory_space<vmem>>, vector<1x8x128xf32>,
      %cst_31 = arith.constant 0.000000e+00 : f32
      %42 = vector.broadcast %cst_31 : f32 to vector<1x8x128xf32>
      %c0_32 = arith.constant 0 : index
      %c0_33 = arith.constant 0 : index
      %c0_34 = arith.constant 0 : index
      %43 = vector.load %arg5[%c0_32, %c0_33, %c0_34] : memref<1x8x128xf32, #tpu.memory_space<vmem>>, vector<1x8x128xf32>
      tpu.vector_store %arg5[%c0_32, %c0_33, %c0_34], %42 {strides = array<i32>} : memref<1x8x128xf32, #tpu.memory_space<vmem>>, vector<1x8x128xf32>,
      %cst_35 = arith.constant 0.000000e+00 : f32
      %44 = vector.broadcast %cst_35 : f32 to vector<1x8x128xf32>
      %c0_36 = arith.constant 0 : index
      %c0_37 = arith.constant 0 : index
      %c0_38 = arith.constant 0 : index
      %45 = vector.load %arg6[%c0_36, %c0_37, %c0_38] : memref<1x8x128xf32, #tpu.memory_space<vmem>>, vector<1x8x128xf32>
      tpu.vector_store %arg6[%c0_36, %c0_37, %c0_38], %44 {strides = array<i32>} : memref<1x8x128xf32, #tpu.memory_space<vmem>>, vector<1x8x128xf32>,
    } else {
    }
    %c0 = arith.constant 0 : index
    %c0_1 = arith.constant 0 : index
    %3 = vector.load %arg2[%c0, %c0_1] : memref<16x128xf32, #tpu.memory_space<vmem>>, vector<16x128xf32>
    %c0_2 = arith.constant 0 : index
    %c0_3 = arith.constant 0 : index
    %4 = vector.load %arg3[%c0_2, %c0_3] : memref<16x128xf32, #tpu.memory_space<vmem>>, vector<16x128xf32>
    %cst = arith.constant 1.000000e-03 : f32
    %cst_4 = arith.constant 9.990000e-01 : f32
    %5 = vector.broadcast %cst : f32 to vector<16x128xf32>
    %6 = arith.maximumf %5, %3 : vector<16x128xf32>
    %7 = vector.broadcast %cst_4 : f32 to vector<16x128xf32>
    %8 = arith.minimumf %7, %6 : vector<16x128xf32>
    %cst_5 = arith.constant 1.000000e+00 : f32
    %9 = vector.broadcast %cst_5 : f32 to vector<16x128xf32>
    %10 = arith.subf %9, %8 : vector<16x128xf32>
    %11 = arith.mulf %10, %10 : vector<16x128xf32>
    %12 = arith.mulf %8, %8 : vector<16x128xf32>
    %13 = math.log %8 : vector<16x128xf32>
    %14 = math.log %10 : vector<16x128xf32>
    %15 = arith.mulf %12, %14 : vector<16x128xf32>
    %16 = arith.mulf %11, %13 : vector<16x128xf32>
    %17 = arith.subf %16, %15 : vector<16x128xf32>
    %18 = arith.mulf %4, %17 : vector<16x128xf32>
    %19 = arith.addf %18, %15 : vector<16x128xf32>
    %20 = arith.mulf %3, %4 : vector<16x128xf32>
    %21 = arith.addf %3, %4 : vector<16x128xf32>
    %c0_6 = arith.constant 0 : index
    %c0_7 = arith.constant 0 : index
    %c0_8 = arith.constant 0 : index
    %22 = vector.load %arg4[%c0_6, %c0_7, %c0_8] : memref<1x8x128xf32, #tpu.memory_space<vmem>>, vector<1x8x128xf32>
    %23 = vector.shape_cast %19 : vector<16x128xf32> to vector<2x8x128xf32>
    %cst_9 = arith.constant dense<0.000000e+00> : vector<8x128xf32>
    %24 = vector.multi_reduction <add>, %23, %cst_9 [0] : vector<2x8x128xf32> to vector<8x128xf32>
    %25 = vector.shape_cast %24 : vector<8x128xf32> to vector<1x8x128xf32>
    %26 = arith.addf %22, %25 : vector<1x8x128xf32>
    %c0_10 = arith.constant 0 : index
    %c0_11 = arith.constant 0 : index
    %c0_12 = arith.constant 0 : index
    %27 = vector.load %arg4[%c0_10, %c0_11, %c0_12] : memref<1x8x128xf32, #tpu.memory_space<vmem>>, vector<1x8x128xf32>
    tpu.vector_store %arg4[%c0_10, %c0_11, %c0_12], %26 {strides = array<i32>} : memref<1x8x128xf32, #tpu.memory_space<vmem>>, vector<1x8x128xf32>,
    %c0_13 = arith.constant 0 : index
    %c0_14 = arith.constant 0 : index
    %c0_15 = arith.constant 0 : index
    %28 = vector.load %arg5[%c0_13, %c0_14, %c0_15] : memref<1x8x128xf32, #tpu.memory_space<vmem>>, vector<1x8x128xf32>
    %29 = vector.shape_cast %20 : vector<16x128xf32> to vector<2x8x128xf32>
    %cst_16 = arith.constant dense<0.000000e+00> : vector<8x128xf32>
    %30 = vector.multi_reduction <add>, %29, %cst_16 [0] : vector<2x8x128xf32> to vector<8x128xf32>
    %31 = vector.shape_cast %30 : vector<8x128xf32> to vector<1x8x128xf32>
    %32 = arith.addf %28, %31 : vector<1x8x128xf32>
    %c0_17 = arith.constant 0 : index
    %c0_18 = arith.constant 0 : index
    %c0_19 = arith.constant 0 : index
    %33 = vector.load %arg5[%c0_17, %c0_18, %c0_19] : memref<1x8x128xf32, #tpu.memory_space<vmem>>, vector<1x8x128xf32>
    tpu.vector_store %arg5[%c0_17, %c0_18, %c0_19], %32 {strides = array<i32>} : memref<1x8x128xf32, #tpu.memory_space<vmem>>, vector<1x8x128xf32>,
    %c0_20 = arith.constant 0 : index
    %c0_21 = arith.constant 0 : index
    %c0_22 = arith.constant 0 : index
    %34 = vector.load %arg6[%c0_20, %c0_21, %c0_22] : memref<1x8x128xf32, #tpu.memory_space<vmem>>, vector<1x8x128xf32>
    %35 = vector.shape_cast %21 : vector<16x128xf32> to vector<2x8x128xf32>
    %cst_23 = arith.constant dense<0.000000e+00> : vector<8x128xf32>
    %36 = vector.multi_reduction <add>, %35, %cst_23 [0] : vector<2x8x128xf32> to vector<8x128xf32>
    %37 = vector.shape_cast %36 : vector<8x128xf32> to vector<1x8x128xf32>
    %38 = arith.addf %34, %37 : vector<1x8x128xf32>
    %c0_24 = arith.constant 0 : index
    %c0_25 = arith.constant 0 : index
    %c0_26 = arith.constant 0 : index
    %39 = vector.load %arg6[%c0_24, %c0_25, %c0_26] : memref<1x8x128xf32, #tpu.memory_space<vmem>>, vector<1x8x128xf32>
    tpu.vector_store %arg6[%c0_24, %c0_25, %c0_26], %38 {strides = array<i32>} : memref<1x8x128xf32, #tpu.memory_space<vmem>>, vector<1x8x128xf32>,
    return
  }
  func.func @transform_0(%arg0: i32, %arg1: i32) -> (i32, i32) {
    %c1_i32 = arith.constant 1 : i32
    %0 = arith.muli %arg0, %c1_i32 : i32
    %1 = arith.addi %0, %arg1 : i32
    %c0_i32 = arith.constant 0 : i32
    %c0_i32_0 = arith.constant 0 : i32
    return %1, %c0_i32 : i32, i32
  }
  func.func @transform_1(%arg0: i32, %arg1: i32) -> (i32, i32) {
    %c1_i32 = arith.constant 1 : i32
    %0 = arith.muli %arg0, %c1_i32 : i32
    %1 = arith.addi %0, %arg1 : i32
    %c0_i32 = arith.constant 0 : i32
    %c0_i32_0 = arith.constant 0 : i32
    return %1, %c0_i32 : i32, i32
  }
  func.func @transform_2(%arg0: i32, %arg1: i32) -> (i32, i32, i32) {
    %c0_i32 = arith.constant 0 : i32
    %c0_i32_0 = arith.constant 0 : i32
    %c0_i32_1 = arith.constant 0 : i32
    return %arg0, %c0_i32, %c0_i32_0 : i32, i32, i32
  }
  func.func @transform_3(%arg0: i32, %arg1: i32) -> (i32, i32, i32) {
    %c0_i32 = arith.constant 0 : i32
    %c0_i32_0 = arith.constant 0 : i32
    %c0_i32_1 = arith.constant 0 : i32
    return %arg0, %c0_i32, %c0_i32_0 : i32, i32, i32
  }
  func.func @transform_4(%arg0: i32, %arg1: i32) -> (i32, i32, i32) {
    %c0_i32 = arith.constant 0 : i32
    %c0_i32_0 = arith.constant 0 : i32
    %c0_i32_1 = arith.constant 0 : i32
    return %arg0, %c0_i32, %c0_i32_0 : i32, i32, i32
  }
}

</mosaic_0001>

<llo_original>
// kernel: tpu_custom_call.1
$region0: #{tpu_custom_call.1}
  #allocation0 [shape = 'u32[]', space=smem, size = 0x4, offset = 0x4, fixed_abs, tag = 'smem constant byte address 0x4 - core index']
  #allocation1 [shape = 'u32[144,128]{1,0:T(1,128)}', space=vmem, size = 0x12000, scoped, tag = 'internal scratch']
  %s0 = inlined_call_operand.hbm [shape: f32[16,128], index: 0, kind: input, shape index: {}]
  %s1 = inlined_call_operand.hbm [shape: f32[16,128], index: 1, kind: input, shape index: {}]
  %s2 = inlined_call_operand.hbm [shape: f32[1,8,128], index: 2, kind: output, shape index: {0}]
  %s3 = inlined_call_operand.hbm [shape: f32[1,8,128], index: 3, kind: output, shape index: {1}]
  %s4 = inlined_call_operand.hbm [shape: f32[1,8,128], index: 4, kind: output, shape index: {2}]
  %5 = xla_tuple %s2, %s3, %s4
  %s6 = sld [smem:[#allocation0]]
  $region46: #{tpu_custom_call.1} parent=0
    _
  %s8 = ssub.s32 1, %s6
  %s9 = scalar_select 0, %s8, %s6
  $region1: #{tpu_custom_call.1} parent=0
    #allocation2 [shape = 'u8[8192]{0}', space=vmem, size = 0x2000, scoped, tag = 'input window, operand 0, single buffered']
    #allocation3 [shape = 's32[1]{0}', space=sflag, size = 0x4, scoped, tag = 'scoped memory for tpu_custom_call.1']
    #allocation4 [shape = 's32[1]{0}', space=sflag, size = 0x4, scoped, tag = 'scoped memory for tpu_custom_call.1']
    #allocation5 [shape = 'u8[8192]{0}', space=vmem, size = 0x2000, scoped, tag = 'input window, operand 1, single buffered']
    #allocation6 [shape = 's32[1]{0}', space=sflag, size = 0x4, scoped, tag = 'scoped memory for tpu_custom_call.1']
    #allocation7 [shape = 'u8[4096]{0}', space=vmem, size = 0x1000, scoped, tag = 'output window, operand 0, single buffered']
    #allocation8 [shape = 'u8[4096]{0}', space=vmem, size = 0x1000, scoped, tag = 'output window, operand 1, single buffered']
    #allocation9 [shape = 's32[1]{0}', space=sflag, size = 0x4, scoped, tag = 'scoped memory for tpu_custom_call.1']
    #allocation10 [shape = 'u8[4096]{0}', space=vmem, size = 0x1000, scoped, tag = 'output window, operand 2, single buffered']
    %10 = vsyncpa [#allocation3], 0
    %11 = vsyncpa [#allocation6], 0
    %12 = vsyncpa [#allocation4], 0
    %13 = vsyncpa [#allocation9], 0
    // Predicated region
    $region2: #{tpu_custom_call.1} parent=1 // pred_check
      _
    $region3: #{tpu_custom_call.1} parent=1 // pred_check_branch
      %15 = sbr.rel (0) target = $region5
    $region4: #{tpu_custom_call.1} parent=1 // pred_region
      %s16 = sadd.s32 0, 0
      %s17 = smul.u32 2, %s16
      %s19 = ssub.s32 256, 256
      %20 = vsyncadd [#allocation3], %s19
      %s21 = smul.addr %s17, 128
      %s22 = scalar_lea.hbm %s0, %s21
      %s23 = sshll.u32 [#allocation2], 4
      %s24 = int_to_ptr.vmem [resolvable:$true] %s23
      %29 = dma.hbm_to_vmem [thread:$0]  %s22, 256, %s24, [#allocation3], 128, 128, 8
    $region5: #{tpu_custom_call.1} parent=1 // pred_fallthru
      _
    // Predicated region
    $region6: #{tpu_custom_call.1} parent=1 // pred_check
      _
    $region7: #{tpu_custom_call.1} parent=1 // pred_check_branch
      %31 = sbr.rel (0) target = $region9
    $region8: #{tpu_custom_call.1} parent=1 // pred_region
      %s32 = sadd.s32 0, 0
      %s33 = smul.u32 2, %s32
      %s35 = ssub.s32 256, 256
      %36 = vsyncadd [#allocation6], %s35
      %s37 = smul.addr %s33, 128
      %s38 = scalar_lea.hbm %s1, %s37
      %s39 = sshll.u32 [#allocation5], 4
      %s40 = int_to_ptr.vmem [resolvable:$true] %s39
      %45 = dma.hbm_to_vmem [thread:$0]  %s38, 256, %s40, [#allocation6], 128, 128, 8
    $region9: #{tpu_custom_call.1} parent=1 // pred_fallthru
      _
    // Predicated region
    $region10: #{tpu_custom_call.1} parent=1 // pred_check
      _
    $region11: #{tpu_custom_call.1} parent=1 // pred_check_branch
      %47 = sbr.rel (0) target = $region13
    $region12: #{tpu_custom_call.1} parent=1 // pred_region
      %48 = dma.done [#allocation3], 256
    $region13: #{tpu_custom_call.1} parent=1 // pred_fallthru
      _
    // Predicated region
    $region14: #{tpu_custom_call.1} parent=1 // pred_check
      _
    $region15: #{tpu_custom_call.1} parent=1 // pred_check_branch
      %50 = sbr.rel (0) target = $region17
    $region16: #{tpu_custom_call.1} parent=1 // pred_region
      %51 = dma.done [#allocation6], 256
    $region17: #{tpu_custom_call.1} parent=1 // pred_fallthru
      _
    %s52 = sadd.s32 0, 0
    %s53 = smul.u32 2, %s52
    %s54 = sadd.s32 0, 0
    %s55 = smul.u32 2, %s54
    %p56 = scmp.eq.s32.totalorder 0, 0
    // Predicated region
    $region18: #{tpu_custom_call.1} parent=1 // pred_check
      %p57 = pneg %p56
    $region19: #{tpu_custom_call.1} parent=1 // pred_check_branch
      %59 = sbr.rel (%p57) target = $region21
    $region20: #{tpu_custom_call.1} parent=1 // pred_region
      %60 = vst [vmem:[#allocation7] sm:$0xff] 0.0
      %61 = vst [vmem:[#allocation8] sm:$0xff] 0.0
      %62 = vst [vmem:[#allocation10] sm:$0xff] 0.0
    $region21: #{tpu_custom_call.1} parent=1 // pred_fallthru
      _
    %v63 = vld [vmem:[#allocation2] sm:$0xff]
    %v64 = vld [vmem:[#allocation2 + $0x8] sm:$0xff]
    %v65 = vld [vmem:[#allocation5] sm:$0xff]
    %v66 = vld [vmem:[#allocation5 + $0x8] sm:$0xff]
    %v67 = vmax.f32 %v63, 0.001
    %v68 = vmax.f32 %v64, 0.001
    %v69 = vmin.f32 %v67, 0.999
    %v70 = vmin.f32 %v68, 0.999
    %v71 = vsub.f32 1.0, %v69
    %v72 = vsub.f32 1.0, %v70
    %v73 = vmul.f32 %v71, %v71
    %v74 = vmul.f32 %v72, %v72
    %v75 = vmul.f32 %v69, %v69
    %v76 = vmul.f32 %v70, %v70
    %v77 = vlog2.pop %v69
    %v78 = vmul.f32 %v77, 0.6931472
    %v79 = vlog2.pop %v70
    %v80 = vmul.f32 %v79, 0.6931472
    %v81 = vlog2.pop %v71
    %v82 = vmul.f32 %v81, 0.6931472
    %v83 = vlog2.pop %v72
    %v84 = vmul.f32 %v83, 0.6931472
    %v85 = vmul.f32 %v75, %v82
    %v86 = vmul.f32 %v76, %v84
    %v87 = vmul.f32 %v73, %v78
    %v88 = vmul.f32 %v74, %v80
    %v89 = vsub.f32 %v87, %v85
    %v90 = vsub.f32 %v88, %v86
    %v91 = vmul.f32 %v65, %v89
    %v92 = vmul.f32 %v66, %v90
    %v93 = vadd.f32 %v91, %v85
    %v94 = vadd.f32 %v92, %v86
    %v95 = vmul.f32 %v63, %v65
    %v96 = vmul.f32 %v64, %v66
    %v97 = vadd.f32 %v63, %v65
    %v98 = vadd.f32 %v64, %v66
    %v99 = vld [vmem:[#allocation7] sm:$0xff]
    %v100 = vadd.f32 %v93, %v94
    %v101 = vadd.f32 %v99, %v100
    %102 = vst [vmem:[#allocation7] sm:$0xff] %v101
    %v103 = vld [vmem:[#allocation8] sm:$0xff]
    %v104 = vadd.f32 %v95, %v96
    %v105 = vadd.f32 %v103, %v104
    %106 = vst [vmem:[#allocation8] sm:$0xff] %v105
    %v107 = vld [vmem:[#allocation10] sm:$0xff]
    %v108 = vadd.f32 %v97, %v98
    %v109 = vadd.f32 %v107, %v108
    %110 = vst [vmem:[#allocation10] sm:$0xff] %v109
    // Predicated region
    $region22: #{tpu_custom_call.1} parent=1 // pred_check
      _
    $region23: #{tpu_custom_call.1} parent=1 // pred_check_branch
      %112 = sbr.rel (0) target = $region25
    $region24: #{tpu_custom_call.1} parent=1 // pred_region
      %s114 = ssub.s32 128, 128
      %115 = vsyncadd [#allocation4], %s114
      %s117 = sshll.u32 [#allocation7], 4
      %s118 = int_to_ptr.vmem [resolvable:$true] %s117
      %120 = dma.vmem_to_hbm [thread:$0]  %s118, 128, %s2, [#allocation4]
    $region25: #{tpu_custom_call.1} parent=1 // pred_fallthru
      _
    // Predicated region
    $region26: #{tpu_custom_call.1} parent=1 // pred_check
      _
    $region27: #{tpu_custom_call.1} parent=1 // pred_check_branch
      %122 = sbr.rel (0) target = $region29
    $region28: #{tpu_custom_call.1} parent=1 // pred_region
      %s124 = ssub.s32 128, 128
      %125 = vsyncadd [#allocation9], %s124
      %s127 = sshll.u32 [#allocation8], 4
      %s128 = int_to_ptr.vmem [resolvable:$true] %s127
      %130 = dma.vmem_to_hbm [thread:$0]  %s128, 128, %s3, [#allocation9]
    $region29: #{tpu_custom_call.1} parent=1 // pred_fallthru
      _
    // Predicated region
    $region30: #{tpu_custom_call.1} parent=1 // pred_check
      _
    $region31: #{tpu_custom_call.1} parent=1 // pred_check_branch
      %132 = sbr.rel (0) target = $region33
    $region32: #{tpu_custom_call.1} parent=1 // pred_region
      %s134 = ssub.s32 128, 128
      %135 = vsyncadd [#allocation9], %s134
      %s137 = sshll.u32 [#allocation10], 4
      %s138 = int_to_ptr.vmem [resolvable:$true] %s137
      %140 = dma.vmem_to_hbm [thread:$0]  %s138, 128, %s4, [#allocation9]
    $region33: #{tpu_custom_call.1} parent=1 // pred_fallthru
      _
    // Predicated region
    $region34: #{tpu_custom_call.1} parent=1 // pred_check
      _
    $region35: #{tpu_custom_call.1} parent=1 // pred_check_branch
      %142 = sbr.rel (0) target = $region37
    $region36: #{tpu_custom_call.1} parent=1 // pred_region
      %143 = dma.done [#allocation4], 128
    $region37: #{tpu_custom_call.1} parent=1 // pred_fallthru
      _
    // Predicated region
    $region38: #{tpu_custom_call.1} parent=1 // pred_check
      _
    $region39: #{tpu_custom_call.1} parent=1 // pred_check_branch
      %145 = sbr.rel (0) target = $region41
    $region40: #{tpu_custom_call.1} parent=1 // pred_region
      %146 = dma.done [#allocation9], 128
    $region41: #{tpu_custom_call.1} parent=1 // pred_fallthru
      _
    // Predicated region
    $region42: #{tpu_custom_call.1} parent=1 // pred_check
      _
    $region43: #{tpu_custom_call.1} parent=1 // pred_check_branch
      %148 = sbr.rel (0) target = $region45
    $region44: #{tpu_custom_call.1} parent=1 // pred_region
      %149 = dma.done [#allocation9], 128
    $region45: #{tpu_custom_call.1} parent=1 // pred_fallthru
      _
    %150 = vsyncpa [#allocation3], 1
    %151 = vsyncpa [#allocation6], 1
    %152 = vsyncpa [#allocation4], 1
    %153 = vsyncpa [#allocation9], 1

</llo_original>
